<compile_context>
chip_gen: v6e
topology: v6e:2x2x1
jax: 0.10.0
libtpu: 0.0.40
codegen_flags: <defaults>
</compile_context>

<pallas_src>
import functools
import math

import jax
import jax.numpy as jnp
from jax.experimental import pallas as pl
from jax.experimental.pallas import tpu as pltpu


def _round_up(v, m):
    return ((v + m - 1) // m) * m


def _cdiv(a, b):
    return (a + b - 1) // b


def _sublane_align(dtype):
    itemsize = jnp.dtype(dtype).itemsize
    if itemsize >= 4:
        return 8
    if itemsize == 2:
        return 16
    return 32


@functools.lru_cache(maxsize=None)
def _vmem_budget_bytes():
    """Per-generation VMEM budget (leaves headroom for double-buffering)."""
    try:
        cap = int(pltpu.get_tpu_info().vmem_capacity_bytes)
        return min(cap * 3 // 4, 96 << 20)
    except Exception:
        pass
    try:
        kind = jax.devices()[0].device_kind.lower()
        cap = (64 << 20) if "7" in kind else (128 << 20)   # v7x: 64 MiB / TC
        return min(cap * 3 // 4, 96 << 20)
    except Exception:
        return 48 << 20   # safe on every generation


def _working_set_bytes(tm, tn, tk, in_bytes, out_bytes):
    x_tile = tm * tk * in_bytes
    w_tile = tk * tn * in_bytes
    b_tile = tn * 4
    o_tile = tm * tn * out_bytes
    acc = tm * tn * 4
    # double-buffered inputs/outputs + resident f32 accumulator
    return 2 * (x_tile + w_tile + b_tile + o_tile) + acc


def _pick_k_tile(in_dim, tk_max, k_align=128):
    """K tile (multiple of k_align, <= tk_max) minimizing K-direction padding."""
    tk_max = max(k_align, (tk_max // k_align) * k_align)
    k_min_pad = _round_up(in_dim, k_align)
    if k_min_pad <= tk_max:
        return k_min_pad
    t = tk_max
    while t >= k_align:
        if k_min_pad % t == 0:
            return t
        t -= k_align
    return tk_max


def _linear_kernel(x_ref, w_ref, b_ref, o_ref, acc_ref):
    # x_ref: (tm, tk), w_ref: (tk, tn), b_ref: (1, tn) f32, o_ref: (tm, tn)
    k = pl.program_id(2)

    @pl.when(k == 0)
    def _():
        acc_ref[...] = jnp.zeros_like(acc_ref)

    acc_ref[...] += jnp.dot(x_ref[...], w_ref[...],
                            preferred_element_type=jnp.float32)

    @pl.when(k == pl.num_programs(2) - 1)
    def _():
        # bias added exactly once, in f32, then cast to output dtype.
        o_ref[...] = (acc_ref[...] + b_ref[...]).astype(o_ref.dtype)


def _linear_pallas_2d(x2d, weight_t, bias_f32, *, tm, tn, tk, mxu_dtype=None):
    m, in_dim = x2d.shape
    _, out_dim = weight_t.shape
    out_dtype = x2d.dtype

    feed_dtype = jnp.dtype(mxu_dtype) if mxu_dtype is not None else jnp.dtype(x2d.dtype)
    in_bytes = feed_dtype.itemsize
    out_bytes = jnp.dtype(out_dtype).itemsize
    sub = _sublane_align(feed_dtype)

    # ---- tile selection: lane-dense, MXU-friendly, VMEM-budgeted ----------
    tm = max(sub, _round_up(tm, sub))
    tn = max(128, _round_up(tn, 128))
    tk = max(128, _round_up(tk, 128))

    tm_eff = min(tm, _round_up(m, sub))
    tn_eff = min(tn, _round_up(out_dim, 128))
    tk_eff = _pick_k_tile(in_dim, tk)

    budget = _vmem_budget_bytes()
    while (_working_set_bytes(tm_eff, tn_eff, tk_eff, in_bytes, out_bytes) > budget
           and (tm_eff > sub or tn_eff > 128 or tk_eff > 128)):
        if tk_eff >= max(tm_eff, tn_eff) and tk_eff > 128:
            tk_eff = max(128, ((tk_eff // 2) // 128) * 128)
        elif tn_eff >= tm_eff and tn_eff > 128:
            tn_eff = max(128, ((tn_eff // 2) // 128) * 128)
        else:
            tm_eff = max(sub, ((tm_eff // 2) // sub) * sub)

    # Ensure the parallel (M, N) grid axes have >=2 blocks on large problems
    # so v7x megacore actually splits work across both TensorCores.
    if _cdiv(m, tm_eff) * _cdiv(out_dim, tn_eff) < 2:
        if m >= 2 * max(sub, 128):
            tm_eff = _round_up(_cdiv(m, 2), sub)
        elif out_dim >= 2 * 128 and tn_eff > 128:
            tn_eff = _round_up(_cdiv(out_dim, 2), 128)

    k_pad = _round_up(in_dim, tk_eff)

    # ---- minimal padding: only the reduction (K) axis must be zero-filled --
    xp = x2d
    wp = weight_t
    if k_pad != in_dim:
        xp = jnp.pad(x2d, ((0, 0), (0, k_pad - in_dim)))
        wp = jnp.pad(weight_t, ((0, k_pad - in_dim), (0, 0)))
    if mxu_dtype is not None:
        xp = xp.astype(feed_dtype)
        wp = wp.astype(feed_dtype)
    bp = bias_f32.reshape(1, out_dim)           # bias stays f32 end-to-end

    grid = (_cdiv(m, tm_eff), _cdiv(out_dim, tn_eff), k_pad // tk_eff)

    flops = 2 * m * out_dim * k_pad
    bytes_accessed = (xp.size * xp.dtype.itemsize + wp.size * wp.dtype.itemsize
                      + bp.size * bp.dtype.itemsize + m * out_dim * out_bytes)

    return pl.pallas_call(
        _linear_kernel,
        out_shape=jax.ShapeDtypeStruct((m, out_dim), out_dtype),
        grid_spec=pltpu.PrefetchScalarGridSpec(
            num_scalar_prefetch=0,
            grid=grid,
            in_specs=[
                pl.BlockSpec((tm_eff, tk_eff), lambda i, j, k: (i, k)),   # x
                pl.BlockSpec((tk_eff, tn_eff), lambda i, j, k: (k, j)),   # W^T
                pl.BlockSpec((1, tn_eff), lambda i, j, k: (0, j)),        # bias (f32)
            ],
            out_specs=pl.BlockSpec((tm_eff, tn_eff), lambda i, j, k: (i, j)),
            scratch_shapes=[pltpu.VMEM((tm_eff, tn_eff), jnp.float32)],
        ),
        compiler_params=pltpu.CompilerParams(
            dimension_semantics=("parallel", "parallel", "arbitrary"),
            vmem_limit_bytes=budget),
        cost_estimate=pl.CostEstimate(flops=flops, transcendentals=0,
                                      bytes_accessed=bytes_accessed),
    )(xp, wp, bp)


def linear_norm(x, weight_t, bias=None, *, tm=512, tn=512, tk=1024,
                mxu_dtype=None, use_pallas=None):
    """y = x @ weight_t + bias over the last dim of x (== nn.Linear forward).

    x:         (..., in_dim)
    weight_t:  (in_dim, out_dim)  (transposed PyTorch weight)
    bias:      (out_dim,) or None
    mxu_dtype: optional lower-precision dtype (e.g. jnp.bfloat16) for the MXU
               operands; accumulation and bias add stay in f32.
    use_pallas: True/False to force a path; None = auto (tiny problems go to XLA).
    """
    in_dim, out_dim = weight_t.shape
    bias_f32 = (jnp.zeros((out_dim,), jnp.float32) if bias is None
                else bias.astype(jnp.float32))

    lead_shape = x.shape[:-1]
    m = int(math.prod(lead_shape)) if lead_shape else 1

    if use_pallas is None:
        # For tiny problems per-grid-step overhead + padding waste dominate;
        # XLA's fused GEMM is strictly better there.
        use_pallas = (m * in_dim * out_dim) >= (256 * 256 * 256)

    if not use_pallas:
        y = jnp.matmul(x, weight_t) + bias_f32
        return y.astype(x.dtype)

    x2d = x.reshape(m, in_dim)
    out = _linear_pallas_2d(x2d, weight_t, bias_f32,
                            tm=tm, tn=tn, tk=tk, mxu_dtype=mxu_dtype)
    return out.reshape(*lead_shape, out_dim)


def init_linear_norm_params(key, in_dim, out_dim, w_init_gain="linear"):
    """Xavier-uniform weight (gain per torch.nn.init.calculate_gain) + uniform
    bias matching torch.nn.Linear defaults (uniform(-1/sqrt(in), 1/sqrt(in)))."""
    gains = {"linear": 1.0, "relu": math.sqrt(2.0), "tanh": 5.0 / 3.0,
             "sigmoid": 1.0}
    gain = gains.get(w_init_gain, 1.0)
    k_w, k_b = jax.random.split(key)
    bound_w = gain * math.sqrt(6.0 / (in_dim + out_dim))
    w = jax.random.uniform(k_w, (out_dim, in_dim), jnp.float32,
                           minval=-bound_w, maxval=bound_w)
    bound_b = 1.0 / math.sqrt(in_dim)
    b = jax.random.uniform(k_b, (out_dim,), jnp.float32,
                           minval=-bound_b, maxval=bound_b)
    # store weight transposed for the kernel: (in_dim, out_dim)
    return w.T, b


if __name__ == "__main__":
    key = jax.random.PRNGKey(0)
    k_x, k_p, k_x2, k_p2 = jax.random.split(key, 4)

    # Small demo shape consistent with the module: (..., in_dim) -> (..., out_dim)
    batch, seq, in_dim, out_dim = 2, 8, 32, 64
    x = jax.random.normal(k_x, (batch, seq, in_dim), jnp.float32)
    w_t, b = init_linear_norm_params(k_p, in_dim, out_dim, w_init_gain="linear")

    y = linear_norm(x, w_t, b, use_pallas=True)   # force the Pallas path
    jax.block_until_ready(y)
    y_ref = x @ w_t + b
    assert y.shape == (batch, seq, out_dim)
    assert jnp.allclose(y, y_ref, atol=1e-5, rtol=1e-5)

    # Second shape exercising multi-block grid, megacore M-split and ragged N.
    in2, out2 = 384, 320
    x2 = jax.random.normal(k_x2, (4, 96, in2), jnp.float32)
    w2_t, b2 = init_linear_norm_params(k_p2, in2, out2, w_init_gain="relu")
    y2 = linear_norm(x2, w2_t, b2)                # auto path -> Pallas
    jax.block_until_ready(y2)
    y2_ref = x2 @ w2_t + b2
    assert y2.shape == (4, 96, out2)
    assert jnp.allclose(y2, y2_ref, atol=1e-4, rtol=1e-4)

    print("KERNEL_OK")
</pallas_src>

<mosaic_0001>
module attributes {stable_mosaic.version = 11 : i64} {
  func.func @_linear_kernel(%arg0: i32, %arg1: i32, %arg2: i32, %arg3: memref<16x128xf32, #tpu.memory_space<vmem>>, %arg4: memref<128x128xf32, #tpu.memory_space<vmem>>, %arg5: memref<1x128xf32, #tpu.memory_space<vmem>>, %arg6: memref<16x128xf32, #tpu.memory_space<vmem>>, %arg7: memref<16x128xf32, #tpu.memory_space<vmem>>) attributes {dimension_semantics = [#tpu.dimension_semantics<parallel>, #tpu.dimension_semantics<parallel>, #tpu.dimension_semantics<arbitrary>], iteration_bounds = array<i64: 1, 1, 1>, scalar_prefetch = 0 : i64, scratch_operands = 1 : i64, tpu.core_type = #tpu.core_type<tc>, window_params = [{transform_indices = @transform_0, window_bounds = array<i64: 16, 128>}, {transform_indices = @transform_1, window_bounds = array<i64: 128, 128>}, {transform_indices = @transform_2, window_bounds = array<i64: 1, 128>}, {transform_indices = @transform_3, window_bounds = array<i64: 16, 128>}]} {
    %c0_i32 = arith.constant 0 : i32
    %0 = arith.cmpi eq, %arg2, %c0_i32 : i32
    %1 = arith.extui %0 : i1 to i32
    %c0_i32_0 = arith.constant 0 : i32
    %2 = arith.cmpi ne, %1, %c0_i32_0 : i32
    scf.if %2 {
      %cst_10 = arith.constant 0.000000e+00 : f32
      %12 = vector.broadcast %cst_10 : f32 to vector<16x128xf32>
      %c0_11 = arith.constant 0 : index
      %c0_12 = arith.constant 0 : index
      %13 = vector.load %arg7[%c0_11, %c0_12] : memref<16x128xf32, #tpu.memory_space<vmem>>, vector<16x128xf32>
      tpu.vector_store %arg7[%c0_11, %c0_12], %12 {strides = array<i32>} : memref<16x128xf32, #tpu.memory_space<vmem>>, vector<16x128xf32>,
    } else {
    }
    %c0 = arith.constant 0 : index
    %c0_1 = arith.constant 0 : index
    %3 = vector.load %arg7[%c0, %c0_1] : memref<16x128xf32, #tpu.memory_space<vmem>>, vector<16x128xf32>
    %c0_2 = arith.constant 0 : index
    %c0_3 = arith.constant 0 : index
    %4 = vector.load %arg3[%c0_2, %c0_3] : memref<16x128xf32, #tpu.memory_space<vmem>>, vector<16x128xf32>
    %c0_4 = arith.constant 0 : index
    %c0_5 = arith.constant 0 : index
    %5 = vector.load %arg4[%c0_4, %c0_5] : memref<128x128xf32, #tpu.memory_space<vmem>>, vector<128x128xf32>
    %cst = arith.constant dense<0.000000e+00> : vector<16x128xf32>
    %6 = tpu.matmul %4, %5, %cst {dimension_numbers = #tpu.dot_dimension_numbers<[1], [0], [0], [1], [0, 0, 1, 1], [], []>} : vector<16x128xf32>, vector<128x128xf32>, vector<16x128xf32> -> vector<16x128xf32>
    %7 = arith.addf %3, %6 : vector<16x128xf32>
    %c0_6 = arith.constant 0 : index
    %c0_7 = arith.constant 0 : index
    %8 = vector.load %arg7[%c0_6, %c0_7] : memref<16x128xf32, #tpu.memory_space<vmem>>, vector<16x128xf32>
    tpu.vector_store %arg7[%c0_6, %c0_7], %7 {strides = array<i32>} : memref<16x128xf32, #tpu.memory_space<vmem>>, vector<16x128xf32>,
    %c0_i32_8 = arith.constant 0 : i32
    %9 = arith.cmpi eq, %arg2, %c0_i32_8 : i32
    %10 = arith.extui %9 : i1 to i32
    %c0_i32_9 = arith.constant 0 : i32
    %11 = arith.cmpi ne, %10, %c0_i32_9 : i32
    scf.if %11 {
      %c0_10 = arith.constant 0 : index
      %c0_11 = arith.constant 0 : index
      %12 = vector.load %arg7[%c0_10, %c0_11] : memref<16x128xf32, #tpu.memory_space<vmem>>, vector<16x128xf32>
      %c0_12 = arith.constant 0 : index
      %c0_13 = arith.constant 0 : index
      %13 = vector.load %arg5[%c0_12, %c0_13] : memref<1x128xf32, #tpu.memory_space<vmem>>, vector<1x128xf32>
      %14 = vector.broadcast %13 : vector<1x128xf32> to vector<16x128xf32>
      %15 = arith.addf %12, %14 : vector<16x128xf32>
      %c0_14 = arith.constant 0 : index
      %c0_15 = arith.constant 0 : index
      %16 = vector.load %arg6[%c0_14, %c0_15] : memref<16x128xf32, #tpu.memory_space<vmem>>, vector<16x128xf32>
      tpu.vector_store %arg6[%c0_14, %c0_15], %15 {strides = array<i32>} : memref<16x128xf32, #tpu.memory_space<vmem>>, vector<16x128xf32>,
    } else {
    }
    return
  }
  func.func @transform_0(%arg0: i32, %arg1: i32, %arg2: i32) -> (i32, i32) {
    %c0_i32 = arith.constant 0 : i32
    return %arg0, %arg2 : i32, i32
  }
  func.func @transform_1(%arg0: i32, %arg1: i32, %arg2: i32) -> (i32, i32) {
    %c0_i32 = arith.constant 0 : i32
    return %arg2, %arg1 : i32, i32
  }
  func.func @transform_2(%arg0: i32, %arg1: i32, %arg2: i32) -> (i32, i32) {
    %c0_i32 = arith.constant 0 : i32
    %c0_i32_0 = arith.constant 0 : i32
    return %c0_i32, %arg1 : i32, i32
  }
  func.func @transform_3(%arg0: i32, %arg1: i32, %arg2: i32) -> (i32, i32) {
    %c0_i32 = arith.constant 0 : i32
    return %arg0, %arg1 : i32, i32
  }
}

</mosaic_0001>

<llo_original>
// kernel: tpu_custom_call.1
$region0: #{tpu_custom_call.1}
  #allocation0 [shape = 'u32[]', space=smem, size = 0x4, offset = 0x4, fixed_abs, tag = 'smem constant byte address 0x4 - core index']
  #allocation1 [shape = 'u32[144,128]{1,0:T(1,128)}', space=vmem, size = 0x12000, scoped, tag = 'internal scratch']
  #allocation2 [shape = 'f32[16,128]{1,0:T(8,128)}', space=vmem, size = 0x2000, scoped, tag = 'scratch operand']
  %s0 = inlined_call_operand.vmem [shape: f32[16,128], index: 0, kind: input, shape index: {}]
  %s1 = inlined_call_operand.vmem [shape: f32[128,64], index: 1, kind: input, shape index: {}]
  %s2 = inlined_call_operand.vmem [shape: f32[1,64], index: 2, kind: input, shape index: {}]
  %s3 = inlined_call_operand.hbm [shape: f32[16,64], index: 3, kind: output, shape index: {}]
  %s4 = sld [smem:[#allocation0]]
  $region30: #{tpu_custom_call.1} parent=0
    _
  %s6 = ssub.s32 1, %s4
  %s7 = scalar_select 0, %s6, %s4
  $region1: #{tpu_custom_call.1} parent=0
    #allocation3 [shape = 'u8[8192]{0}', space=vmem, size = 0x2000, scoped, tag = 'output window, operand 0, single buffered']
    #allocation4 [shape = 's32[1]{0}', space=sflag, size = 0x4, scoped, tag = 'scoped memory for tpu_custom_call.1']
    %8 = vsyncpa [#allocation4], 0
    // Predicated region
    $region2: #{tpu_custom_call.1} parent=1 // pred_check
      _
    $region3: #{tpu_custom_call.1} parent=1 // pred_check_branch
      %10 = sbr.rel (0) target = $region5
    $region4: #{tpu_custom_call.1} parent=1 // pred_region
      _
    $region5: #{tpu_custom_call.1} parent=1 // pred_fallthru
      _
    // Predicated region
    $region6: #{tpu_custom_call.1} parent=1 // pred_check
      _
    $region7: #{tpu_custom_call.1} parent=1 // pred_check_branch
      %12 = sbr.rel (0) target = $region9
    $region8: #{tpu_custom_call.1} parent=1 // pred_region
      _
    $region9: #{tpu_custom_call.1} parent=1 // pred_fallthru
      _
    // Predicated region
    $region10: #{tpu_custom_call.1} parent=1 // pred_check
      _
    $region11: #{tpu_custom_call.1} parent=1 // pred_check_branch
      %14 = sbr.rel (0) target = $region13
    $region12: #{tpu_custom_call.1} parent=1 // pred_region
      _
    $region13: #{tpu_custom_call.1} parent=1 // pred_fallthru
      _
    %p15 = scmp.eq.s32.totalorder 0, 0
    // Predicated region
    $region14: #{tpu_custom_call.1} parent=1 // pred_check
      %p16 = pneg %p15
    $region15: #{tpu_custom_call.1} parent=1 // pred_check_branch
      %18 = sbr.rel (%p16) target = $region17
    $region16: #{tpu_custom_call.1} parent=1 // pred_region
      %19 = vst [vmem:[#allocation2] sm:$0xff] 0.0
      %20 = vst [vmem:[#allocation2 + $0x8] sm:$0xff] 0.0
    $region17: #{tpu_custom_call.1} parent=1 // pred_fallthru
      _
    %v21 = vld [vmem:[#allocation2] sm:$0xff]
    %v22 = vld [vmem:[#allocation2 + $0x8] sm:$0xff]
    %v23 = vld [vmem:[%s0] sm:$0xff]
    %v24 = vld [vmem:[%s0 + $0x8] sm:$0xff]
    %v25 = vld [vmem:[%s1] sm:$0xff]
    %v26 = vld [vmem:[%s1 + $0x8] sm:$0xff]
    %v27 = vld [vmem:[%s1 + $0x10] sm:$0xff]
    %v28 = vld [vmem:[%s1 + $0x18] sm:$0xff]
    %v29 = vld [vmem:[%s1 + $0x20] sm:$0xff]
    %v30 = vld [vmem:[%s1 + $0x28] sm:$0xff]
    %v31 = vld [vmem:[%s1 + $0x30] sm:$0xff]
    %v32 = vld [vmem:[%s1 + $0x38] sm:$0xff]
    %v33 = vld [vmem:[%s1 + $0x40] sm:$0xff]
    %v34 = vld [vmem:[%s1 + $0x48] sm:$0xff]
    %v35 = vld [vmem:[%s1 + $0x50] sm:$0xff]
    %v36 = vld [vmem:[%s1 + $0x58] sm:$0xff]
    %v37 = vld [vmem:[%s1 + $0x60] sm:$0xff]
    %v38 = vld [vmem:[%s1 + $0x68] sm:$0xff]
    %v39 = vld [vmem:[%s1 + $0x70] sm:$0xff]
    %v40 = vld [vmem:[%s1 + $0x78] sm:$0xff]
    %41 = vmatprep.subr.mxu0 0.0
    %42 = vmatpush1.msra.mxu0 %v40
    %43 = vmatprep.subr.mxu0 0.0
    %44 = vmatpush1.msra.mxu0 %v39
    %45 = vmatprep.subr.mxu0 0.0
    %46 = vmatpush1.msra.mxu0 %v38
    %47 = vmatprep.subr.mxu0 0.0
    %48 = vmatpush1.msra.mxu0 %v37
    %49 = vmatprep.subr.mxu0 0.0
    %50 = vmatpush1.msra.mxu0 %v36
    %51 = vmatprep.subr.mxu0 0.0
    %52 = vmatpush1.msra.mxu0 %v35
    %53 = vmatprep.subr.mxu0 0.0
    %54 = vmatpush1.msra.mxu0 %v34
    %55 = vmatprep.subr.mxu0 0.0
    %56 = vmatpush1.msra.mxu0 %v33
    %57 = vmatprep.subr.mxu0 0.0
    %58 = vmatpush1.msra.mxu0 %v32
    %59 = vmatprep.subr.mxu0 0.0
    %60 = vmatpush1.msra.mxu0 %v31
    %61 = vmatprep.subr.mxu0 0.0
    %62 = vmatpush1.msra.mxu0 %v30
    %63 = vmatprep.subr.mxu0 0.0
    %64 = vmatpush1.msra.mxu0 %v29
    %65 = vmatprep.subr.mxu0 0.0
    %66 = vmatpush1.msra.mxu0 %v28
    %67 = vmatprep.subr.mxu0 0.0
    %68 = vmatpush1.msra.mxu0 %v27
    %69 = vmatprep.subr.mxu0 0.0
    %70 = vmatpush1.msra.mxu0 %v26
    %71 = vmatprep.subr.mxu0 0.0
    %72 = vmatpush1.msra.mxu0 %v25
    %73 = vmatprep.subr.mxu0 0.0
    %74 = vmatpush2.msra.mxu0 0.0
    %75 = vmatprep.subr.mxu0 0.0
    %76 = vmatpush2.msra.mxu0 0.0
    %77 = vmatprep.subr.mxu0 0.0
    %78 = vmatpush2.msra.mxu0 0.0
    %79 = vmatprep.subr.mxu0 0.0
    %80 = vmatpush2.msra.mxu0 0.0
    %81 = vmatprep.subr.mxu0 0.0
    %82 = vmatpush2.msra.mxu0 0.0
    %83 = vmatprep.subr.mxu0 0.0
    %84 = vmatpush2.msra.mxu0 0.0
    %85 = vmatprep.subr.mxu0 0.0
    %86 = vmatpush2.msra.mxu0 0.0
    %87 = vmatprep.subr.mxu0 0.0
    %88 = vmatpush2.msra.mxu0 0.0
    %89 = vmatprep.subr.mxu0 0.0
    %90 = vmatpush2.msra.mxu0 0.0
    %91 = vmatprep.subr.mxu0 0.0
    %92 = vmatpush2.msra.mxu0 0.0
    %93 = vmatprep.subr.mxu0 0.0
    %94 = vmatpush2.msra.mxu0 0.0
    %95 = vmatprep.subr.mxu0 0.0
    %96 = vmatpush2.msra.mxu0 0.0
    %97 = vmatprep.subr.mxu0 0.0
    %98 = vmatpush2.msra.mxu0 0.0
    %99 = vmatprep.subr.mxu0 0.0
    %100 = vmatpush2.msra.mxu0 0.0
    %101 = vmatprep.subr.mxu0 0.0
    %102 = vmatpush2.msra.mxu0 0.0
    %103 = vmatprep.subr.mxu0 0.0
    %104 = vmatpush2.msra.mxu0 0.0
    %105 = vmatprep.mubr.f32.mxu0 0.0
    %106 = vmatmul.mubr.f32.gmra.mxu0 %v23
    %v107 = vpop.f32.mrf.mxu0
    %v108 = vadd.f32 0.0, %v107
    %v109 = vpop.f32.mrf.mxu0
    %110 = vmatprep.mubr.f32.mxu0 0.0
    %111 = vmatmul.mubr.f32.gmra.mxu0 %v24
    %v112 = vpop.f32.mrf.mxu0
    %v113 = vadd.f32 0.0, %v112
    %v114 = vpop.f32.mrf.mxu0
    %115 = vdwg.mxu0
    %v116 = vadd.f32 %v21, %v108
    %v117 = vadd.f32 %v22, %v113
    %118 = vst [vmem:[#allocation2] sm:$0xff] %v116
    %119 = vst [vmem:[#allocation2 + $0x8] sm:$0xff] %v117
    // Predicated region
    $region18: #{tpu_custom_call.1} parent=1 // pred_check
      %p120 = pneg %p15
    $region19: #{tpu_custom_call.1} parent=1 // pred_check_branch
      %122 = sbr.rel (%p120) target = $region21
    $region20: #{tpu_custom_call.1} parent=1 // pred_region
      %v123 = vld [vmem:[#allocation2] sm:$0xff]
      %v124 = vld [vmem:[#allocation2 + $0x8] sm:$0xff]
      %v125 = vld [vmem:[%s2] sm:$0x1]
      %v127 = vlaneseq
      %v128 = vshrl.u32 %v127, 7
      %v129 = vsub.s32 0, %v128
      %v130 = vrot.slane %v125, %v129
      %v132 = vadd.f32 %v123, %v130
      %v133 = vadd.f32 %v124, %v130
      %134 = vst [vmem:[#allocation3] sm:$0xff] %v132
      %135 = vst [vmem:[#allocation3 + $0x8] sm:$0xff] %v133
    $region21: #{tpu_custom_call.1} parent=1 // pred_fallthru
      _
    // Predicated region
    $region22: #{tpu_custom_call.1} parent=1 // pred_check
      _
    $region23: #{tpu_custom_call.1} parent=1 // pred_check_branch
      %137 = sbr.rel (0) target = $region25
    $region24: #{tpu_custom_call.1} parent=1 // pred_region
      %s139 = ssub.s32 256, 256
      %140 = vsyncadd [#allocation4], %s139
      %s141 = sshll.u32 [#allocation3], 4
      %s142 = int_to_ptr.vmem [resolvable:$true] %s141
      %147 = dma.vmem_to_hbm [thread:$0]  %s142, 256, %s3, [#allocation4], 128, 128, 8
    $region25: #{tpu_custom_call.1} parent=1 // pred_fallthru
      _
    // Predicated region
    $region26: #{tpu_custom_call.1} parent=1 // pred_check
      _
    $region27: #{tpu_custom_call.1} parent=1 // pred_check_branch
      %149 = sbr.rel (0) target = $region29
    $region28: #{tpu_custom_call.1} parent=1 // pred_region
      %150 = dma.done [#allocation4], 256
    $region29: #{tpu_custom_call.1} parent=1 // pred_fallthru
      _
    %151 = vsyncpa [#allocation4], 1

</llo_original>
